<compile_context>
chip_gen: v5e
topology: v5e:2x2
jax: 0.10.0
libtpu: 0.0.40
codegen_flags: <defaults>
</compile_context>

<pallas_src>
import functools

import jax
import jax.numpy as jnp
from jax.experimental import pallas as pl
from jax.experimental.pallas import tpu as pltpu


_HBM_GATHER_DEPTH = 8      # outstanding row DMAs in the HBM-gather ring
# TODO(synk): re-derive the one-hot/gather crossover per chip (~512-1024 on v5e,
# ~2048 on v6e/v7x) once both paths are profiled on hardware.
_ONEHOT_VOCAB_MAX = 1024

# Resolved lazily: Precision.HIGH if this Mosaic build lowers it, else Precision.HIGHEST.
_f32_dot_precision = None


def _round_up(x, m):
    return (x + m - 1) // m * m


def _vmem_capacity_bytes():
    """Physical per-core VMEM; conservative 64 MiB (v7x) if the query fails."""
    try:
        info = pltpu.get_tpu_info()
        for name in ("vmem_capacity_bytes", "vmem_size_bytes"):
            v = getattr(info, name, None)
            if v:
                return int(v)
    except Exception:
        pass
    return 64 << 20


# --------------------------------------------------------------------------------------
# Kernels
# --------------------------------------------------------------------------------------

def _embed_onehot_kernel(tok_ids_ref, pos_ids_ref, cat_tab_ref, out_ref, *, vocab, precision):
    """Fused token + position gather as ONE one-hot matmul on the MXU.

    Each output row's one-hot has exactly two 1s: lane tok_id (< vocab) and lane
    vocab + pos_id (>= vocab), so  one_hot @ [tok_table; pos_table] == tok_row + pos_row.
    """
    tq = out_ref.shape[0]
    vp = cat_tab_ref.shape[0]
    lanes = jax.lax.broadcasted_iota(jnp.int32, (tq, vp), 1)
    hit = jnp.logical_or(lanes == tok_ids_ref[...],
                         lanes == (pos_ids_ref[...] + vocab))
    oh = hit.astype(cat_tab_ref.dtype)
    acc = jnp.dot(oh, cat_tab_ref[...],
                  preferred_element_type=jnp.float32,
                  precision=precision)
    out_ref[...] = acc.astype(out_ref.dtype)


def _embed_vmem_gather_kernel(tok_ids_ref, pos_ids_ref, tok_tab_ref, pos_tab_ref, out_ref, *, tq):
    """Row gather from VMEM-resident tables, 8 rows per iteration.

    Ids come from SMEM scalar prefetch; 8 dynamically indexed (1, E) rows are stacked into
    one (8, E) tile so the add and the output store are dense (unmasked vst) instead of
    1/8-sublane-occupancy per-row ops.
    """
    base = pl.program_id(0) * tq

    def group(g, carry):
        g8 = pl.multiple_of(g * 8, 8)
        tok_rows = [tok_tab_ref[pl.ds(tok_ids_ref[base + g8 + r], 1), :] for r in range(8)]
        pos_rows = [pos_tab_ref[pl.ds(pos_ids_ref[base + g8 + r], 1), :] for r in range(8)]
        tile = (jnp.concatenate(tok_rows, axis=0).astype(jnp.float32)
                + jnp.concatenate(pos_rows, axis=0).astype(jnp.float32))
        out_ref[pl.ds(g8, 8), :] = tile.astype(out_ref.dtype)
        return carry

    jax.lax.fori_loop(0, tq // 8, group, 0)


def _embed_hbm_gather_kernel(tok_ids_ref, pos_ids_ref, tok_hbm_ref, pos_hbm_ref, out_ref,
                             tok_buf, pos_buf, sem, *, tq, depth):
    """Row gather from HBM-resident tables via a `depth`-deep ring of outstanding DMAs.

    Each (1, E) row fetch is only E*itemsize bytes -> DMA-latency bound, so `depth` copies
    are kept in flight; slot r % depth is refilled for row r + depth right after row r is
    consumed.  Exactly tq starts and tq waits per (grid step, table).
    """
    base = pl.program_id(0) * tq

    def start_fetch(r, slot):
        t = tok_ids_ref[base + r]
        p = pos_ids_ref[base + r]
        pltpu.make_async_copy(tok_hbm_ref.at[pl.ds(t, 1), :], tok_buf.at[slot],
                              sem.at[0, slot]).start()
        pltpu.make_async_copy(pos_hbm_ref.at[pl.ds(p, 1), :], pos_buf.at[slot],
                              sem.at[1, slot]).start()

    @pl.loop(0, depth)                      # prime the ring (depth <= tq always)
    def _(r):
        start_fetch(r, r)

    @pl.loop(0, tq)
    def _(r):
        slot = jax.lax.rem(r, depth)
        pltpu.make_async_copy(tok_hbm_ref.at[pl.ds(0, 1), :], tok_buf.at[slot],
                              sem.at[0, slot]).wait()
        pltpu.make_async_copy(pos_hbm_ref.at[pl.ds(0, 1), :], pos_buf.at[slot],
                              sem.at[1, slot]).wait()
        row = tok_buf[slot].astype(jnp.float32) + pos_buf[slot].astype(jnp.float32)
        out_ref[pl.ds(r, 1), :] = row.astype(out_ref.dtype)

        @pl.when(r + depth < tq)
        def _():
            start_fetch(r + depth, slot)    # refill this slot only after its row is consumed


# --------------------------------------------------------------------------------------
# Wrapper
# --------------------------------------------------------------------------------------

def gpt_embedding(token_ids, pos_ids, token_table, pos_table, *,
                  mode=None, block_tokens=None):
    """Equivalent of GPT_Embedding.forward(input, pos): token_emb[input] + pos_emb[pos]."""
    global _f32_dot_precision

    B, T = token_ids.shape
    V, E = token_table.shape
    P = pos_table.shape[0]
    out_dtype = token_table.dtype
    itemsize = jnp.dtype(out_dtype).itemsize
    pos_table = pos_table.astype(out_dtype)

    tok_flat = token_ids.reshape(-1).astype(jnp.int32)
    # PyTorch broadcasting: pos may be (T,) or (B, T).
    pos_flat = jnp.broadcast_to(pos_ids, (B, T)).reshape(-1).astype(jnp.int32)
    n = B * T

    # dtype-aware sublane granularity for the output block (keeps stores unmasked & dense).
    sub = {4: 8, 2: 16, 1: 32}.get(itemsize, 8)

    cap = _vmem_capacity_bytes()
    budget = cap - (10 << 20)                     # headroom for compiler-internal scratch

    def _residency(m, tq):
        out_blk = tq * E * itemsize
        if m == "onehot":
            return ((V + P) * E * itemsize        # stacked table, resident once (unblocked)
                    + 2 * out_blk                  # double-buffered output block
                    + tq * (V + P) * 4             # one-hot temporary
                    + tq * E * 4                   # f32 accumulator
                    + 8 * tq * 4)                  # id blocks (double-buffered)
        if m == "vmem_gather":
            return (V + P) * E * itemsize + 2 * out_blk + 16 * E * 4
        return 2 * out_blk + 2 * _HBM_GATHER_DEPTH * E * itemsize          # hbm_gather

    # ---- choose the path from the actual VMEM budget -----------------------------------
    if mode is None:
        tq_probe = min(_round_up(512, sub), _round_up(n, sub))
        if V <= _ONEHOT_VOCAB_MAX and _residency("onehot", tq_probe) <= budget:
            mode = "onehot"
        elif _residency("vmem_gather", tq_probe) <= budget:
            mode = "vmem_gather"
        else:
            mode = "hbm_gather"                   # GPT-2-size / f32 tables on any chip

    # ---- tokens per grid step -----------------------------------------------------------
    if block_tokens is None:
        # 512 sits inside the reviewed sweet spots (512-1024 on v5e/v6e, 256-512 on v7x).
        block_tokens = 512 if mode == "onehot" else 256
    tq = min(_round_up(block_tokens, sub), _round_up(n, sub))
    if n % tq != 0:
        # Prefer a tq that divides n so the kernel writes the final buffer directly
        # (the post-kernel [:n] slice would otherwise copy the whole output again).
        t = (tq // sub) * sub
        while t >= sub:
            if n % t == 0:
                break
            t -= sub
        if t >= max(sub, 64):
            tq = t
    n_pad = _round_up(n, tq)
    nb = n_pad // tq

    if n_pad != n:                                # pad with row index 0 (always valid)
        pad = n_pad - n
        tok_flat = jnp.concatenate([tok_flat, jnp.zeros((pad,), jnp.int32)])
        pos_flat = jnp.concatenate([pos_flat, jnp.zeros((pad,), jnp.int32)])

    # ---- scoped VMEM limit: actual residency, clamped below physical VMEM ---------------
    vmem_limit = int(_residency(mode, tq)) + (8 << 20)
    vmem_limit = max(vmem_limit, 32 << 20)
    vmem_limit = min(vmem_limit, cap - (2 << 20))

    # ---- dispatch ------------------------------------------------------------------------
    if mode == "onehot":
        cat_table = jnp.concatenate([token_table, pos_table], axis=0)       # (V+P, E)

        if itemsize < 4:
            precisions = (jax.lax.Precision.DEFAULT,)     # bf16/fp16 table: 1 pass, exact
        elif _f32_dot_precision is not None:
            precisions = (_f32_dot_precision,)
        else:
            # 3-pass bf16_3x first (half of HIGHEST's MXU work, ~2^-18 relative error on a
            # 0/1 one-hot gather); 6-pass HIGHEST if HIGH is not lowered by this build.
            precisions = (jax.lax.Precision.HIGH, jax.lax.Precision.HIGHEST)

        out = None
        err = None
        for prec in precisions:
            call = pl.pallas_call(
                functools.partial(_embed_onehot_kernel, vocab=V, precision=prec),
                out_shape=jax.ShapeDtypeStruct((n_pad, E), out_dtype),
                grid=(nb,),
                in_specs=[
                    pl.BlockSpec((tq, 1), lambda i: (i, 0)),                 # token ids
                    pl.BlockSpec((tq, 1), lambda i: (i, 0)),                 # position ids
                    pl.BlockSpec(memory_space=pltpu.MemorySpace.VMEM),       # table, x1 VMEM
                ],
                out_specs=pl.BlockSpec((tq, E), lambda i: (i, 0)),
                compiler_params=pltpu.CompilerParams(
                    dimension_semantics=("parallel",),     # token blocks split over cores
                    vmem_limit_bytes=vmem_limit),
            )
            try:
                out = call(tok_flat.reshape(n_pad, 1), pos_flat.reshape(n_pad, 1), cat_table)
            except Exception as e:            # e.g. NotImplementedError lowering HIGH
                err = e
                continue
            if itemsize >= 4:
                _f32_dot_precision = prec
            break
        if out is None:
            raise err

    elif mode == "vmem_gather":
        grid_spec = pltpu.PrefetchScalarGridSpec(
            num_scalar_prefetch=2,                                           # ids -> SMEM
            grid=(nb,),
            in_specs=[
                pl.BlockSpec(memory_space=pltpu.MemorySpace.VMEM),           # tok table, x1
                pl.BlockSpec(memory_space=pltpu.MemorySpace.VMEM),           # pos table, x1
            ],
            out_specs=pl.BlockSpec((tq, E), lambda i, *_: (i, 0)),
        )
        out = pl.pallas_call(
            functools.partial(_embed_vmem_gather_kernel, tq=tq),
            out_shape=jax.ShapeDtypeStruct((n_pad, E), out_dtype),
            grid_spec=grid_spec,
            compiler_params=pltpu.CompilerParams(
                dimension_semantics=("parallel",),
                vmem_limit_bytes=vmem_limit),
        )(tok_flat, pos_flat, token_table, pos_table)

    else:  # "hbm_gather": tables stay in HBM, deep-pipelined row DMAs
        depth = min(_HBM_GATHER_DEPTH, tq)
        grid_spec = pltpu.PrefetchScalarGridSpec(
            num_scalar_prefetch=2,                                           # ids -> SMEM
            grid=(nb,),
            in_specs=[
                pl.BlockSpec(memory_space=pl.ANY),                           # tok table (HBM)
                pl.BlockSpec(memory_space=pl.ANY),                           # pos table (HBM)
            ],
            out_specs=pl.BlockSpec((tq, E), lambda i, *_: (i, 0)),
            scratch_shapes=[
                pltpu.VMEM((depth, 1, E), out_dtype),                        # token row ring
                pltpu.VMEM((depth, 1, E), out_dtype),                        # pos row ring
                pltpu.SemaphoreType.DMA((2, depth)),
            ],
        )
        out = pl.pallas_call(
            functools.partial(_embed_hbm_gather_kernel, tq=tq, depth=depth),
            out_shape=jax.ShapeDtypeStruct((n_pad, E), out_dtype),
            grid_spec=grid_spec,
            compiler_params=pltpu.CompilerParams(
                dimension_semantics=("arbitrary",),
                vmem_limit_bytes=vmem_limit),
        )(tok_flat, pos_flat, token_table, pos_table)

    if n_pad != n:
        out = out[:n]          # only reached when no divisor-sized tq was found
    return out.reshape(B, T, E)


# --------------------------------------------------------------------------------------
# Self-test
# --------------------------------------------------------------------------------------

if __name__ == "__main__":
    # Small shapes consistent with the module: vocab=64, n_embd=128, n_positions=16.
    vocab_size, n_embd, n_positions = 64, 128, 16
    B, T = 2, 8

    key = jax.random.PRNGKey(0)
    k_tok, k_pos, k_ids = jax.random.split(key, 3)

    token_table = jax.random.normal(k_tok, (vocab_size, n_embd), dtype=jnp.float32)
    pos_table = jax.random.normal(k_pos, (n_positions, n_embd), dtype=jnp.float32)
    token_ids = jax.random.randint(k_ids, (B, T), 0, vocab_size, dtype=jnp.int32)
    pos_ids = jnp.arange(T, dtype=jnp.int32)          # standard GPT position ids

    # Pure-JAX reference: token_emb(input) + pos_emb(pos)
    ref = jnp.take(token_table, token_ids, axis=0) + jnp.take(pos_table, pos_ids, axis=0)[None]

    # Hot path (auto -> fused one-hot MXU gather). bf16_3x precision => ~4e-5 worst-case abs
    # error vs the exact f32 gather; exact if the build falls back to HIGHEST.
    out = jax.block_until_ready(gpt_embedding(token_ids, pos_ids, token_table, pos_table))
    assert out.shape == (B, T, n_embd)
    assert jnp.allclose(out, ref, atol=1e-4, rtol=1e-4), "one-hot path mismatch vs reference"

    # VMEM-resident grouped row-gather fallback (exact).
    out_g = jax.block_until_ready(
        gpt_embedding(token_ids, pos_ids, token_table, pos_table, mode="vmem_gather"))
    assert jnp.allclose(out_g, ref, atol=1e-6), "vmem-gather path mismatch vs reference"

    # HBM-resident deep-pipelined row-DMA gather (exact; the path large vocabularies take).
    out_h = jax.block_until_ready(
        gpt_embedding(token_ids, pos_ids, token_table, pos_table, mode="hbm_gather"))
    assert jnp.allclose(out_h, ref, atol=1e-6), "hbm-gather path mismatch vs reference"

    print("KERNEL_OK")
</pallas_src>

<mosaic_0001>
module attributes {stable_mosaic.version = 11 : i64} {
  func.func @_embed_onehot_kernel(%arg0: i32, %arg1: memref<16x1xi32, #tpu.memory_space<vmem>>, %arg2: memref<16x1xi32, #tpu.memory_space<vmem>>, %arg3: memref<80x128xf32, #tpu.memory_space<vmem>>, %arg4: memref<16x128xf32, #tpu.memory_space<vmem>>) attributes {dimension_semantics = [#tpu.dimension_semantics<parallel>], iteration_bounds = array<i64: 1>, scalar_prefetch = 0 : i64, scratch_operands = 0 : i64, tpu.core_type = #tpu.core_type<tc>, window_params = [{transform_indices = @transform_0, window_bounds = array<i64: 16, 1>}, {transform_indices = @transform_1, window_bounds = array<i64: 16, 1>}, {pipeline_mode = #tpu.pipeline_mode<synchronous>, transform_indices = @transform_2, window_bounds = array<i64: 80, 128>}, {transform_indices = @transform_3, window_bounds = array<i64: 16, 128>}]} {
    %0 = tpu.iota {dimensions = array<i32: 1>} : vector<16x80xi32>
    %c0 = arith.constant 0 : index
    %c0_0 = arith.constant 0 : index
    %1 = vector.load %arg1[%c0, %c0_0] : memref<16x1xi32, #tpu.memory_space<vmem>>, vector<16x1xi32>
    %2 = vector.broadcast %1 : vector<16x1xi32> to vector<16x80xi32>
    %3 = arith.cmpi eq, %0, %2 : vector<16x80xi32>
    %c0_1 = arith.constant 0 : index
    %c0_2 = arith.constant 0 : index
    %4 = vector.load %arg2[%c0_1, %c0_2] : memref<16x1xi32, #tpu.memory_space<vmem>>, vector<16x1xi32>
    %c64_i32 = arith.constant 64 : i32
    %5 = vector.broadcast %c64_i32 : i32 to vector<16x1xi32>
    %6 = arith.addi %4, %5 : vector<16x1xi32>
    %7 = vector.broadcast %6 : vector<16x1xi32> to vector<16x80xi32>
    %8 = arith.cmpi eq, %0, %7 : vector<16x80xi32>
    %9 = arith.ori %3, %8 : vector<16x80xi1>
    %10 = arith.extui %9 : vector<16x80xi1> to vector<16x80xi32>
    %11 = arith.sitofp %10 : vector<16x80xi32> to vector<16x80xf32>
    %c0_3 = arith.constant 0 : index
    %c0_4 = arith.constant 0 : index
    %12 = vector.load %arg3[%c0_3, %c0_4] : memref<80x128xf32, #tpu.memory_space<vmem>>, vector<80x128xf32>
    %cst = arith.constant dense<0.000000e+00> : vector<16x128xf32>
    %13 = tpu.matmul %11, %12, %cst {dimension_numbers = #tpu.dot_dimension_numbers<[1], [0], [0], [1], [0, 0, 1, 1], [], []>, precision = #tpu.contract_precision<fp32>} : vector<16x80xf32>, vector<80x128xf32>, vector<16x128xf32> -> vector<16x128xf32>
    %c0_5 = arith.constant 0 : index
    %c0_6 = arith.constant 0 : index
    %14 = vector.load %arg4[%c0_5, %c0_6] : memref<16x128xf32, #tpu.memory_space<vmem>>, vector<16x128xf32>
    tpu.vector_store %arg4[%c0_5, %c0_6], %13 {strides = array<i32>} : memref<16x128xf32, #tpu.memory_space<vmem>>, vector<16x128xf32>,
    return
  }
  func.func @transform_0(%arg0: i32) -> (i32, i32) {
    %c0_i32 = arith.constant 0 : i32
    %c0_i32_0 = arith.constant 0 : i32
    return %arg0, %c0_i32 : i32, i32
  }
  func.func @transform_1(%arg0: i32) -> (i32, i32) {
    %c0_i32 = arith.constant 0 : i32
    %c0_i32_0 = arith.constant 0 : i32
    return %arg0, %c0_i32 : i32, i32
  }
  func.func @transform_2(%arg0: i32) -> (i32, i32) {
    %c0_i32 = arith.constant 0 : i32
    %c0_i32_0 = arith.constant 0 : i32
    %c0_i32_1 = arith.constant 0 : i32
    return %c0_i32, %c0_i32_0 : i32, i32
  }
  func.func @transform_3(%arg0: i32) -> (i32, i32) {
    %c0_i32 = arith.constant 0 : i32
    %c0_i32_0 = arith.constant 0 : i32
    return %arg0, %c0_i32 : i32, i32
  }
}

</mosaic_0001>

<llo_original>
// kernel: tpu_custom_call.1
$region0: #{tpu_custom_call.1}
  #allocation0 [shape = 'u32[]', space=smem, size = 0x4, offset = 0x4, fixed_abs, tag = 'smem constant byte address 0x4 - core index']
  #allocation1 [shape = 'u32[72,128]{1,0:T(1,128)}', space=vmem, size = 0x9000, scoped, tag = 'internal scratch']
  %s0 = inlined_call_operand.vmem [shape: s32[16,1], index: 0, kind: input, shape index: {}]
  %s1 = inlined_call_operand.vmem [shape: s32[16,1], index: 1, kind: input, shape index: {}]
  %s2 = inlined_call_operand.hbm [shape: f32[80,128], index: 2, kind: input, shape index: {}]
  %s3 = inlined_call_operand.hbm [shape: f32[16,128], index: 3, kind: output, shape index: {}]
  %s4 = sld [smem:[#allocation0]]
  $region26: #{tpu_custom_call.1} parent=0
    _
  %s6 = ssub.s32 1, %s4
  %s7 = scalar_select 0, %s6, %s4
  $region1: #{tpu_custom_call.1} parent=0
    #allocation2 [shape = 'u8[40960]{0}', space=vmem, size = 0xa000, scoped, tag = 'input window, operand 2, single buffered']
    #allocation3 [shape = 's32[1]{0}', space=sflag, size = 0x4, scoped, tag = 'scoped memory for tpu_custom_call.1']
    #allocation4 [shape = 's32[1]{0}', space=sflag, size = 0x4, scoped, tag = 'scoped memory for tpu_custom_call.1']
    #allocation5 [shape = 'u8[8192]{0}', space=vmem, size = 0x2000, scoped, tag = 'output window, operand 0, single buffered']
    %8 = vsyncpa [#allocation3], 0
    %9 = vsyncpa [#allocation4], 0
    // Predicated region
    $region2: #{tpu_custom_call.1} parent=1 // pred_check
      _
    $region3: #{tpu_custom_call.1} parent=1 // pred_check_branch
      %11 = sbr.rel (0) target = $region5
    $region4: #{tpu_custom_call.1} parent=1 // pred_region
      _
    $region5: #{tpu_custom_call.1} parent=1 // pred_fallthru
      _
    // Predicated region
    $region6: #{tpu_custom_call.1} parent=1 // pred_check
      _
    $region7: #{tpu_custom_call.1} parent=1 // pred_check_branch
      %13 = sbr.rel (0) target = $region9
    $region8: #{tpu_custom_call.1} parent=1 // pred_region
      _
    $region9: #{tpu_custom_call.1} parent=1 // pred_fallthru
      _
    // Predicated region
    $region10: #{tpu_custom_call.1} parent=1 // pred_check
      _
    $region11: #{tpu_custom_call.1} parent=1 // pred_check_branch
      %15 = sbr.rel (0) target = $region13
    $region12: #{tpu_custom_call.1} parent=1 // pred_region
      %17 = vsyncadd [#allocation3], 0
      %s18 = sshll.u32 %s2, 4
      %s19 = int_to_ptr.hbm [resolvable:$true] %s18
      %s20 = sshll.u32 [#allocation2], 4
      %s21 = int_to_ptr.vmem [resolvable:$true] %s20
      %26 = dma.hbm_to_vmem [thread:$0]  %s19, 1280, %s21, [#allocation3], 128, 128, 8
    $region13: #{tpu_custom_call.1} parent=1 // pred_fallthru
      _
    // Predicated region
    $region14: #{tpu_custom_call.1} parent=1 // pred_check
      _
    $region15: #{tpu_custom_call.1} parent=1 // pred_check_branch
      %28 = sbr.rel (0) target = $region17
    $region16: #{tpu_custom_call.1} parent=1 // pred_region
      %30 = dma.done [#allocation3], 1280
    $region17: #{tpu_custom_call.1} parent=1 // pred_fallthru
      _
    %v31 = vlaneseq
    %v32 = vand.u32 %v31, 127
    %v33 = vld [vmem:[%s0] sm:$0xff]
    %v34 = vld [vmem:[%s0 + $0x8] sm:$0xff]
    %35 = vset.pattern.permute.xlu0 0
    %36 = vperm.xlu0 %35, %v33
    %v37 = vpop.permute.xlu0 %36
    %38 = vset.pattern.permute.xlu0 0
    %39 = vperm.xlu0 %38, %v34
    %v40 = vpop.permute.xlu0 %39
    %vm41 = vcmp.eq.s32.totalorder %v32, %v37
    %vm42 = vcmp.eq.s32.totalorder %v32, %v40
    %v43 = vld [vmem:[%s1] sm:$0xff]
    %v44 = vld [vmem:[%s1 + $0x8] sm:$0xff]
    %v45 = vadd.s32 %v43, 64
    %v46 = vadd.s32 %v44, 64
    %47 = vset.pattern.permute.xlu0 0
    %48 = vperm.xlu0 %47, %v45
    %v49 = vpop.permute.xlu0 %48
    %50 = vset.pattern.permute.xlu0 0
    %51 = vperm.xlu0 %50, %v46
    %v52 = vpop.permute.xlu0 %51
    %vm53 = vcmp.eq.s32.totalorder %v32, %v49
    %vm54 = vcmp.eq.s32.totalorder %v32, %v52
    %vm55 = vmor %vm41, %vm53
    %vm56 = vmor %vm42, %vm54
    %v57 = vsel %vm55, 1, 0
    %v58 = vsel %vm56, 1, 0
    %v59 = vcvt.s32.f32 %v57
    %v60 = vcvt.s32.f32 %v58
    %v61 = vld [vmem:[#allocation2] sm:$0xff]
    %v62 = vld [vmem:[#allocation2 + $0x8] sm:$0xff]
    %v63 = vld [vmem:[#allocation2 + $0x10] sm:$0xff]
    %v64 = vld [vmem:[#allocation2 + $0x18] sm:$0xff]
    %v65 = vld [vmem:[#allocation2 + $0x20] sm:$0xff]
    %v66 = vld [vmem:[#allocation2 + $0x28] sm:$0xff]
    %v67 = vld [vmem:[#allocation2 + $0x30] sm:$0xff]
    %v68 = vld [vmem:[#allocation2 + $0x38] sm:$0xff]
    %v69 = vld [vmem:[#allocation2 + $0x40] sm:$0xff]
    %v70 = vld [vmem:[#allocation2 + $0x48] sm:$0xff]
    %vm71 = vcmask 654336
    %v73 = vsel %vm71, %v59, 0
    %v76 = vsel %vm71, %v60, 0
    %78 = vmatpush.msra.mxu0 0.0
    %79 = vmatpush.msra.mxu0 0.0
    %80 = vmatpush.msra.mxu0 0.0
    %81 = vmatpush.msra.mxu0 0.0
    %82 = vmatpush.msra.mxu0 0.0
    %83 = vmatpush.msra.mxu0 0.0
    %v84 = vand.u32 %v70, 4294901760
    %85 = vmatpush.msra.mxu0 %v84
    %v86 = vand.u32 %v69, 4294901760
    %87 = vmatpush.msra.mxu0 %v86
    %v88 = vand.u32 %v68, 4294901760
    %89 = vmatpush.msra.mxu0 %v88
    %v90 = vand.u32 %v67, 4294901760
    %91 = vmatpush.msra.mxu0 %v90
    %v92 = vand.u32 %v66, 4294901760
    %93 = vmatpush.msra.mxu0 %v92
    %v94 = vand.u32 %v65, 4294901760
    %95 = vmatpush.msra.mxu0 %v94
    %v96 = vand.u32 %v64, 4294901760
    %97 = vmatpush.msra.mxu0 %v96
    %v98 = vand.u32 %v63, 4294901760
    %99 = vmatpush.msra.mxu0 %v98
    %v100 = vand.u32 %v62, 4294901760
    %101 = vmatpush.msra.mxu0 %v100
    %v102 = vand.u32 %v61, 4294901760
    %103 = vmatpush.msra.mxu0 %v102
    %v104 = vand.u32 %v73, 4294901760
    %v105 = vsub.f32 %v73, %v104
    %v106 = vand.u32 %v105, 4294901760
    %v107 = vsub.f32 %v105, %v106
    %v108 = vand.u32 %v107, 4294901760
    %109 = vmatmul.f32.gmra.mxu0 %v108
    %v110 = vpop.f32.mrf.mxu0
    %v111 = vadd.f32 0.0, %v110
    %v112 = vand.u32 %v76, 4294901760
    %v113 = vsub.f32 %v76, %v112
    %v114 = vand.u32 %v113, 4294901760
    %v115 = vsub.f32 %v113, %v114
    %v116 = vand.u32 %v115, 4294901760
    %117 = vmatmul.f32.gmra.mxu0 %v116
    %v118 = vpop.f32.mrf.mxu0
    %v119 = vadd.f32 0.0, %v118
    %120 = vdwg.mxu0
    %121 = vmatpush.msra.mxu0 0.0
    %122 = vmatpush.msra.mxu0 0.0
    %123 = vmatpush.msra.mxu0 0.0
    %124 = vmatpush.msra.mxu0 0.0
    %125 = vmatpush.msra.mxu0 0.0
    %126 = vmatpush.msra.mxu0 0.0
    %v127 = vand.u32 %v70, 4294901760
    %v128 = vsub.f32 %v70, %v127
    %v129 = vand.u32 %v128, 4294901760
    %v130 = vsub.f32 %v128, %v129
    %v131 = vand.u32 %v130, 4294901760
    %132 = vmatpush.msra.mxu0 %v131
    %v133 = vand.u32 %v69, 4294901760
    %v134 = vsub.f32 %v69, %v133
    %v135 = vand.u32 %v134, 4294901760
    %v136 = vsub.f32 %v134, %v135
    %v137 = vand.u32 %v136, 4294901760
    %138 = vmatpush.msra.mxu0 %v137
    %v139 = vand.u32 %v68, 4294901760
    %v140 = vsub.f32 %v68, %v139
    %v141 = vand.u32 %v140, 4294901760
    %v142 = vsub.f32 %v140, %v141
    %v143 = vand.u32 %v142, 4294901760
    %144 = vmatpush.msra.mxu0 %v143
    %v145 = vand.u32 %v67, 4294901760
    %v146 = vsub.f32 %v67, %v145
    %v147 = vand.u32 %v146, 4294901760
    %v148 = vsub.f32 %v146, %v147
    %v149 = vand.u32 %v148, 4294901760
    %150 = vmatpush.msra.mxu0 %v149
    %v151 = vand.u32 %v66, 4294901760
    %v152 = vsub.f32 %v66, %v151
    %v153 = vand.u32 %v152, 4294901760
    %v154 = vsub.f32 %v152, %v153
    %v155 = vand.u32 %v154, 4294901760
    %156 = vmatpush.msra.mxu0 %v155
    %v157 = vand.u32 %v65, 4294901760
    %v158 = vsub.f32 %v65, %v157
    %v159 = vand.u32 %v158, 4294901760
    %v160 = vsub.f32 %v158, %v159
    %v161 = vand.u32 %v160, 4294901760
    %162 = vmatpush.msra.mxu0 %v161
    %v163 = vand.u32 %v64, 4294901760
    %v164 = vsub.f32 %v64, %v163
    %v165 = vand.u32 %v164, 4294901760
    %v166 = vsub.f32 %v164, %v165
    %v167 = vand.u32 %v166, 4294901760
    %168 = vmatpush.msra.mxu0 %v167
    %v169 = vand.u32 %v63, 4294901760
    %v170 = vsub.f32 %v63, %v169
    %v171 = vand.u32 %v170, 4294901760
    %v172 = vsub.f32 %v170, %v171
    %v173 = vand.u32 %v172, 4294901760
    %174 = vmatpush.msra.mxu0 %v173
    %v175 = vand.u32 %v62, 4294901760
    %v176 = vsub.f32 %v62, %v175
    %v177 = vand.u32 %v176, 4294901760
    %v178 = vsub.f32 %v176, %v177
    %v179 = vand.u32 %v178, 4294901760
    %180 = vmatpush.msra.mxu0 %v179
    %v181 = vand.u32 %v61, 4294901760
    %v182 = vsub.f32 %v61, %v181
    %v183 = vand.u32 %v182, 4294901760
    %v184 = vsub.f32 %v182, %v183
    %v185 = vand.u32 %v184, 4294901760
    %186 = vmatpush.msra.mxu0 %v185
    %v187 = vand.u32 %v73, 4294901760
    %188 = vmatmul.f32.gmra.mxu0 %v187
    %v189 = vpop.f32.mrf.mxu0
    %v190 = vadd.f32 %v111, %v189
    %v191 = vand.u32 %v76, 4294901760
    %192 = vmatmul.f32.gmra.mxu0 %v191
    %v193 = vpop.f32.mrf.mxu0
    %v194 = vadd.f32 %v119, %v193
    %195 = vdwg.mxu0
    %196 = vmatpush.msra.mxu0 0.0
    %197 = vmatpush.msra.mxu0 0.0
    %198 = vmatpush.msra.mxu0 0.0
    %199 = vmatpush.msra.mxu0 0.0
    %200 = vmatpush.msra.mxu0 0.0
    %201 = vmatpush.msra.mxu0 0.0
    %v202 = vand.u32 %v70, 4294901760
    %v203 = vsub.f32 %v70, %v202
    %204 = vmatpush.msra.mxu0 %v203
    %v205 = vand.u32 %v69, 4294901760
    %v206 = vsub.f32 %v69, %v205
    %207 = vmatpush.msra.mxu0 %v206
    %v208 = vand.u32 %v68, 4294901760
    %v209 = vsub.f32 %v68, %v208
    %210 = vmatpush.msra.mxu0 %v209
    %v211 = vand.u32 %v67, 4294901760
    %v212 = vsub.f32 %v67, %v211
    %213 = vmatpush.msra.mxu0 %v212
    %v214 = vand.u32 %v66, 4294901760
    %v215 = vsub.f32 %v66, %v214
    %216 = vmatpush.msra.mxu0 %v215
    %v217 = vand.u32 %v65, 4294901760
    %v218 = vsub.f32 %v65, %v217
    %219 = vmatpush.msra.mxu0 %v218
    %v220 = vand.u32 %v64, 4294901760
    %v221 = vsub.f32 %v64, %v220
    %222 = vmatpush.msra.mxu0 %v221
    %v223 = vand.u32 %v63, 4294901760
    %v224 = vsub.f32 %v63, %v223
    %225 = vmatpush.msra.mxu0 %v224
    %v226 = vand.u32 %v62, 4294901760
    %v227 = vsub.f32 %v62, %v226
    %228 = vmatpush.msra.mxu0 %v227
    %v229 = vand.u32 %v61, 4294901760
    %v230 = vsub.f32 %v61, %v229
    %231 = vmatpush.msra.mxu0 %v230
    %v232 = vand.u32 %v73, 4294901760
    %v233 = vsub.f32 %v73, %v232
    %234 = vmatmul.f32.gmra.mxu0 %v233
    %v235 = vpop.f32.mrf.mxu0
    %v236 = vadd.f32 %v190, %v235
    %v237 = vand.u32 %v76, 4294901760
    %v238 = vsub.f32 %v76, %v237
    %239 = vmatmul.f32.gmra.mxu0 %v238
    %v240 = vpop.f32.mrf.mxu0
    %v241 = vadd.f32 %v194, %v240
    %242 = vdwg.mxu0
    %243 = vmatpush.msra.mxu0 0.0
    %244 = vmatpush.msra.mxu0 0.0
    %245 = vmatpush.msra.mxu0 0.0
    %246 = vmatpush.msra.mxu0 0.0
    %247 = vmatpush.msra.mxu0 0.0
    %248 = vmatpush.msra.mxu0 0.0
    %v249 = vand.u32 %v70, 4294901760
    %250 = vmatpush.msra.mxu0 %v249
    %v251 = vand.u32 %v69, 4294901760
    %252 = vmatpush.msra.mxu0 %v251
    %v253 = vand.u32 %v68, 4294901760
    %254 = vmatpush.msra.mxu0 %v253
    %v255 = vand.u32 %v67, 4294901760
    %256 = vmatpush.msra.mxu0 %v255
    %v257 = vand.u32 %v66, 4294901760
    %258 = vmatpush.msra.mxu0 %v257
    %v259 = vand.u32 %v65, 4294901760
    %260 = vmatpush.msra.mxu0 %v259
    %v261 = vand.u32 %v64, 4294901760
    %262 = vmatpush.msra.mxu0 %v261
    %v263 = vand.u32 %v63, 4294901760
    %264 = vmatpush.msra.mxu0 %v263
    %v265 = vand.u32 %v62, 4294901760
    %266 = vmatpush.msra.mxu0 %v265
    %v267 = vand.u32 %v61, 4294901760
    %268 = vmatpush.msra.mxu0 %v267
    %v269 = vand.u32 %v73, 4294901760
    %v270 = vsub.f32 %v73, %v269
    %v271 = vand.u32 %v270, 4294901760
    %272 = vmatmul.f32.gmra.mxu0 %v271
    %v273 = vpop.f32.mrf.mxu0
    %v274 = vadd.f32 %v236, %v273
    %v275 = vand.u32 %v76, 4294901760
    %v276 = vsub.f32 %v76, %v275
    %v277 = vand.u32 %v276, 4294901760
    %278 = vmatmul.f32.gmra.mxu0 %v277
    %v279 = vpop.f32.mrf.mxu0
    %v280 = vadd.f32 %v241, %v279
    %281 = vdwg.mxu0
    %282 = vmatpush.msra.mxu0 0.0
    %283 = vmatpush.msra.mxu0 0.0
    %284 = vmatpush.msra.mxu0 0.0
    %285 = vmatpush.msra.mxu0 0.0
    %286 = vmatpush.msra.mxu0 0.0
    %287 = vmatpush.msra.mxu0 0.0
    %v288 = vand.u32 %v70, 4294901760
    %v289 = vsub.f32 %v70, %v288
    %v290 = vand.u32 %v289, 4294901760
    %291 = vmatpush.msra.mxu0 %v290
    %v292 = vand.u32 %v69, 4294901760
    %v293 = vsub.f32 %v69, %v292
    %v294 = vand.u32 %v293, 4294901760
    %295 = vmatpush.msra.mxu0 %v294
    %v296 = vand.u32 %v68, 4294901760
    %v297 = vsub.f32 %v68, %v296
    %v298 = vand.u32 %v297, 4294901760
    %299 = vmatpush.msra.mxu0 %v298
    %v300 = vand.u32 %v67, 4294901760
    %v301 = vsub.f32 %v67, %v300
    %v302 = vand.u32 %v301, 4294901760
    %303 = vmatpush.msra.mxu0 %v302
    %v304 = vand.u32 %v66, 4294901760
    %v305 = vsub.f32 %v66, %v304
    %v306 = vand.u32 %v305, 4294901760
    %307 = vmatpush.msra.mxu0 %v306
    %v308 = vand.u32 %v65, 4294901760
    %v309 = vsub.f32 %v65, %v308
    %v310 = vand.u32 %v309, 4294901760
    %311 = vmatpush.msra.mxu0 %v310
    %v312 = vand.u32 %v64, 4294901760
    %v313 = vsub.f32 %v64, %v312
    %v314 = vand.u32 %v313, 4294901760
    %315 = vmatpush.msra.mxu0 %v314
    %v316 = vand.u32 %v63, 4294901760
    %v317 = vsub.f32 %v63, %v316
    %v318 = vand.u32 %v317, 4294901760
    %319 = vmatpush.msra.mxu0 %v318
    %v320 = vand.u32 %v62, 4294901760
    %v321 = vsub.f32 %v62, %v320
    %v322 = vand.u32 %v321, 4294901760
    %323 = vmatpush.msra.mxu0 %v322
    %v324 = vand.u32 %v61, 4294901760
    %v325 = vsub.f32 %v61, %v324
    %v326 = vand.u32 %v325, 4294901760
    %327 = vmatpush.msra.mxu0 %v326
    %v328 = vand.u32 %v73, 4294901760
    %329 = vmatmul.f32.gmra.mxu0 %v328
    %v330 = vpop.f32.mrf.mxu0
    %v331 = vadd.f32 %v274, %v330
    %v332 = vand.u32 %v76, 4294901760
    %333 = vmatmul.f32.gmra.mxu0 %v332
    %v334 = vpop.f32.mrf.mxu0
    %v335 = vadd.f32 %v280, %v334
    %336 = vdwg.mxu0
    %337 = vmatpush.msra.mxu0 0.0
    %338 = vmatpush.msra.mxu0 0.0
    %339 = vmatpush.msra.mxu0 0.0
    %340 = vmatpush.msra.mxu0 0.0
    %341 = vmatpush.msra.mxu0 0.0
    %342 = vmatpush.msra.mxu0 0.0
    %v343 = vand.u32 %v70, 4294901760
    %344 = vmatpush.msra.mxu0 %v343
    %v345 = vand.u32 %v69, 4294901760
    %346 = vmatpush.msra.mxu0 %v345
    %v347 = vand.u32 %v68, 4294901760
    %348 = vmatpush.msra.mxu0 %v347
    %v349 = vand.u32 %v67, 4294901760
    %350 = vmatpush.msra.mxu0 %v349
    %v351 = vand.u32 %v66, 4294901760
    %352 = vmatpush.msra.mxu0 %v351
    %v353 = vand.u32 %v65, 4294901760
    %354 = vmatpush.msra.mxu0 %v353
    %v355 = vand.u32 %v64, 4294901760
    %356 = vmatpush.msra.mxu0 %v355
    %v357 = vand.u32 %v63, 4294901760
    %358 = vmatpush.msra.mxu0 %v357
    %v359 = vand.u32 %v62, 4294901760
    %360 = vmatpush.msra.mxu0 %v359
    %v361 = vand.u32 %v61, 4294901760
    %362 = vmatpush.msra.mxu0 %v361
    %v363 = vand.u32 %v73, 4294901760
    %364 = vmatmul.f32.gmra.mxu0 %v363
    %v365 = vpop.f32.mrf.mxu0
    %v366 = vadd.f32 %v331, %v365
    %v367 = vand.u32 %v76, 4294901760
    %368 = vmatmul.f32.gmra.mxu0 %v367
    %v369 = vpop.f32.mrf.mxu0
    %v370 = vadd.f32 %v335, %v369
    %371 = vdwg.mxu0
    %372 = vst [vmem:[#allocation5] sm:$0xff] %v366
    %373 = vst [vmem:[#allocation5 + $0x8] sm:$0xff] %v370
    // Predicated region
    $region18: #{tpu_custom_call.1} parent=1 // pred_check
      _
    $region19: #{tpu_custom_call.1} parent=1 // pred_check_branch
      %375 = sbr.rel (0) target = $region21
    $region20: #{tpu_custom_call.1} parent=1 // pred_region
      %377 = vsyncadd [#allocation4], 0
      %s378 = sshll.u32 [#allocation5], 4
      %s379 = int_to_ptr.vmem [resolvable:$true] %s378
      %s380 = sshll.u32 %s3, 4
      %s381 = int_to_ptr.hbm [resolvable:$true] %s380
      %386 = dma.vmem_to_hbm [thread:$0]  %s379, 256, %s381, [#allocation4], 128, 128, 8
    $region21: #{tpu_custom_call.1} parent=1 // pred_fallthru
      _
    // Predicated region
    $region22: #{tpu_custom_call.1} parent=1 // pred_check
      _
    $region23: #{tpu_custom_call.1} parent=1 // pred_check_branch
      %388 = sbr.rel (0) target = $region25
    $region24: #{tpu_custom_call.1} parent=1 // pred_region
      %390 = dma.done [#allocation4], 256
    $region25: #{tpu_custom_call.1} parent=1 // pred_fallthru
      _
    %391 = vsyncpa [#allocation3], 1
    %392 = vsyncpa [#allocation4], 1

</llo_original>
